<compile_context>
chip_gen: v6e
topology: v6e:2x2x1
jax: 0.10.0
libtpu: 0.0.40
codegen_flags: <defaults>
</compile_context>

<pallas_src>
import jax
import jax.numpy as jnp
from jax.experimental import pallas as pl
from jax.experimental.pallas import tpu as pltpu

_LANES = 128  # fast (lane) axis width of a TPU vreg


def _linear_1x1_kernel(w_ref, b_ref, x_ref, o_ref):
    # w_ref, b_ref: (1, 1) f32 scalars in SMEM
    # x_ref, o_ref: (rows, 128) lane-dense f32 tiles in VMEM
    w = w_ref[0, 0]
    b = b_ref[0, 0]
    # nn.Linear(1, 1) semantics: out = x * w + b  (VPU multiply-add, no MXU).
    o_ref[...] = x_ref[...] * w + b


def my_linear(x, weight, bias):
    """Forward pass of nn.Linear(1, 1).

    x: [N, 1] f32, weight: [1, 1] f32, bias: [1] f32 -> [N, 1] f32.
    """
    n, fin = x.shape
    fout = weight.shape[0]
    assert fin == 1 and fout == 1, "this kernel specializes nn.Linear(1, 1)"

    # Lane-dense repack: [N, 1] -> pad N up to a multiple of 128 -> [rows, 128].
    n_pad = ((n + _LANES - 1) // _LANES) * _LANES
    rows = n_pad // _LANES
    x_flat = jnp.pad(x.reshape(n), (0, n_pad - n))
    x2d = x_flat.reshape(rows, _LANES)

    w2d = weight.reshape(1, 1)
    b2d = bias.reshape(1, 1)

    out2d = pl.pallas_call(
        _linear_1x1_kernel,
        out_shape=jax.ShapeDtypeStruct((rows, _LANES), x.dtype),
        in_specs=[
            # Scalar weight / bias live in SMEM (no VMEM tile, no MXU feed).
            pl.BlockSpec(memory_space=pltpu.MemorySpace.SMEM),
            pl.BlockSpec(memory_space=pltpu.MemorySpace.SMEM),
            # Whole lane-dense activation slab as a single block; block shape
            # equals the full array shape, so the (8, 128) rule is satisfied.
            pl.BlockSpec((rows, _LANES), lambda: (0, 0)),
        ],
        out_specs=pl.BlockSpec((rows, _LANES), lambda: (0, 0)),
    )(w2d, b2d, x2d)

    # Drop the padded tail and restore the [N, 1] PyTorch layout.
    return out2d.reshape(n_pad)[:n].reshape(n, fout)


if __name__ == "__main__":
    key = jax.random.PRNGKey(0)
    kx, kw, kb = jax.random.split(key, 3)

    # Matches the script: x = torch.rand([500, 1]); nn.Linear(1, 1).
    N, FIN, FOUT = 500, 1, 1
    x = jax.random.uniform(kx, (N, FIN), dtype=jnp.float32)

    # nn.Linear default init: U(-1/sqrt(in_features), +1/sqrt(in_features)).
    bound = 1.0 / (FIN ** 0.5)
    weight = jax.random.uniform(kw, (FOUT, FIN), dtype=jnp.float32,
                                minval=-bound, maxval=bound)
    bias = jax.random.uniform(kb, (FOUT,), dtype=jnp.float32,
                              minval=-bound, maxval=bound)

    out = jax.block_until_ready(my_linear(x, weight, bias))

    # Sanity check against a plain-JAX reference (exact nn.Linear semantics).
    ref = x @ weight.T + bias
    assert out.shape == (N, FOUT)
    assert jnp.allclose(out, ref, atol=1e-6, rtol=1e-6)

    print("KERNEL_OK")
</pallas_src>

<mosaic_0001>
module attributes {stable_mosaic.version = 11 : i64} {
  func.func @_linear_1x1_kernel(%arg0: memref<1x1xf32, #tpu.memory_space<smem>>, %arg1: memref<1x1xf32, #tpu.memory_space<smem>>, %arg2: memref<4x128xf32, #tpu.memory_space<vmem>>, %arg3: memref<4x128xf32, #tpu.memory_space<vmem>>) attributes {dimension_semantics = [], scalar_prefetch = 0 : i64, scratch_operands = 0 : i64, tpu.core_type = #tpu.core_type<tc>} {
    %c0 = arith.constant 0 : index
    %c0_0 = arith.constant 0 : index
    %0 = memref.load %arg0[%c0, %c0_0] : memref<1x1xf32, #tpu.memory_space<smem>>
    %c0_1 = arith.constant 0 : index
    %c0_2 = arith.constant 0 : index
    %1 = memref.load %arg1[%c0_1, %c0_2] : memref<1x1xf32, #tpu.memory_space<smem>>
    %c0_3 = arith.constant 0 : index
    %c0_4 = arith.constant 0 : index
    %2 = vector.load %arg2[%c0_3, %c0_4] : memref<4x128xf32, #tpu.memory_space<vmem>>, vector<4x128xf32>
    %3 = vector.broadcast %0 : f32 to vector<4x128xf32>
    %4 = arith.mulf %2, %3 : vector<4x128xf32>
    %5 = vector.broadcast %1 : f32 to vector<4x128xf32>
    %6 = arith.addf %4, %5 : vector<4x128xf32>
    %c0_5 = arith.constant 0 : index
    %c0_6 = arith.constant 0 : index
    %7 = vector.load %arg3[%c0_5, %c0_6] : memref<4x128xf32, #tpu.memory_space<vmem>>, vector<4x128xf32>
    tpu.vector_store %arg3[%c0_5, %c0_6], %6 {strides = array<i32>} : memref<4x128xf32, #tpu.memory_space<vmem>>, vector<4x128xf32>,
    return
  }
}

</mosaic_0001>

<llo_original>
// kernel: tpu_custom_call.1
$region0: #{tpu_custom_call.1}
  #allocation0 [shape = 'u32[]', space=smem, size = 0x4, offset = 0x4, fixed_abs, tag = 'smem constant byte address 0x4 - core index']
  #allocation1 [shape = 'u32[144,128]{1,0:T(1,128)}', space=vmem, size = 0x12000, scoped, tag = 'internal scratch']
  #allocation2 [shape = 'f32[1,1]{1,0:T(1,128)S(6)}', space=smem, size = 0x200, scoped, tag = 'scoped memory for tpu_custom_call.1']
  #allocation3 [shape = 'f32[1,1]{1,0:T(1,128)S(6)}', space=smem, size = 0x200, scoped, tag = 'scoped memory for tpu_custom_call.1']
  %s0 = inlined_call_operand.<no memory space> [shape: f32[1,1], index: 0, kind: input, shape index: {}]
  %s1 = inlined_call_operand.<no memory space> [shape: f32[1,1], index: 1, kind: input, shape index: {}]
  %s2 = inlined_call_operand.vmem [shape: f32[4,128], index: 2, kind: input, shape index: {}]
  %s3 = inlined_call_operand.hbm [shape: f32[4,128], index: 3, kind: output, shape index: {}]
  %s4 = sld [smem:[#allocation0]]
  $region22: #{tpu_custom_call.1} parent=0
    _
  %s6 = ssub.s32 1, %s4
  %s7 = scalar_select 0, %s6, %s4
  %8 = sst [smem:[#allocation2]] %s0
  %9 = sst [smem:[#allocation3]] %s1
  $region1: #{tpu_custom_call.1} parent=0
    #allocation4 [shape = 'u8[2048]{0}', space=vmem, size = 0x800, scoped, tag = 'output window, operand 0, single buffered']
    #allocation5 [shape = 's32[1]{0}', space=sflag, size = 0x4, scoped, tag = 'scoped memory for tpu_custom_call.1']
    %10 = vsyncpa [#allocation5], 0
    // Predicated region
    $region2: #{tpu_custom_call.1} parent=1 // pred_check
      _
    $region3: #{tpu_custom_call.1} parent=1 // pred_check_branch
      %12 = sbr.rel (0) target = $region5
    $region4: #{tpu_custom_call.1} parent=1 // pred_region
      _
    $region5: #{tpu_custom_call.1} parent=1 // pred_fallthru
      _
    // Predicated region
    $region6: #{tpu_custom_call.1} parent=1 // pred_check
      _
    $region7: #{tpu_custom_call.1} parent=1 // pred_check_branch
      %14 = sbr.rel (0) target = $region9
    $region8: #{tpu_custom_call.1} parent=1 // pred_region
      _
    $region9: #{tpu_custom_call.1} parent=1 // pred_fallthru
      _
    // Predicated region
    $region10: #{tpu_custom_call.1} parent=1 // pred_check
      _
    $region11: #{tpu_custom_call.1} parent=1 // pred_check_branch
      %16 = sbr.rel (0) target = $region13
    $region12: #{tpu_custom_call.1} parent=1 // pred_region
      _
    $region13: #{tpu_custom_call.1} parent=1 // pred_fallthru
      _
    %s17 = sld [smem:[#allocation2]]
    %s18 = sld [smem:[#allocation3]]
    %v19 = vld [vmem:[%s2] sm:$0xf]
    %v20 = vstv %s17
    %v21 = vmul.f32 %v19, %v20
    %v22 = vstv %s18
    %v23 = vadd.f32 %v21, %v22
    %24 = vst [vmem:[#allocation4] sm:$0xf] %v23
    // Predicated region
    $region14: #{tpu_custom_call.1} parent=1 // pred_check
      _
    $region15: #{tpu_custom_call.1} parent=1 // pred_check_branch
      %26 = sbr.rel (0) target = $region17
    $region16: #{tpu_custom_call.1} parent=1 // pred_region
      %s28 = ssub.s32 64, 64
      %29 = vsyncadd [#allocation5], %s28
      %s31 = sshll.u32 [#allocation4], 4
      %s32 = int_to_ptr.vmem [resolvable:$true] %s31
      %34 = dma.vmem_to_hbm [thread:$0]  %s32, 64, %s3, [#allocation5]
    $region17: #{tpu_custom_call.1} parent=1 // pred_fallthru
      _
    // Predicated region
    $region18: #{tpu_custom_call.1} parent=1 // pred_check
      _
    $region19: #{tpu_custom_call.1} parent=1 // pred_check_branch
      %36 = sbr.rel (0) target = $region21
    $region20: #{tpu_custom_call.1} parent=1 // pred_region
      %37 = dma.done [#allocation5], 64
    $region21: #{tpu_custom_call.1} parent=1 // pred_fallthru
      _
    %38 = vsyncpa [#allocation5], 1

</llo_original>
